<compile_context>
chip_gen: v6e
topology: v6e:2x2x1
jax: 0.10.0
libtpu: 0.0.40
codegen_flags: <defaults>
</compile_context>

<pallas_src>
from functools import partial

import jax
import jax.numpy as jnp
from jax.experimental import pallas as pl
from jax.experimental.pallas import tpu as pltpu

# --- deterministic module configuration (stands in for __init__ args/params) ---
INPUT_IS_01 = False
OUTPUT_IS_01 = False
LAYER_COUNT = 2
BIG_NUMBER_LIST = (5.0, 3.0)   # torch.nn.Parameter(requires_grad=False), rank-1
NEEDS_GRAMO = False

# VMEM budget for double-buffered (input + output) tiles. Kept <= ~24 MiB so the
# same tiling fits v7x (64 MiB physical / 32 MiB default scoped VMEM) as well as
# v5e / v6e (128 MiB physical).
_VMEM_TILE_BUDGET = 24 * 1024 * 1024


def binarize_kernel(x_ref, o_ref, *, input_is_01, output_is_01,
                    big_number_list, use_sign_fast_path):
    """Elementwise hot path: offset -> (sign test | tanh stack + squash) -> step -> remap."""
    x = x_ref[...].astype(jnp.float32)   # widen in-register only; HBM dtype unchanged

    # offset according to input mode (training pass)
    if input_is_01:
        x = x - 0.5

    if use_sign_fast_path:
        # All big_numbers > 0  =>  every tanh stage and the final tanh/sigmoid are
        # strictly increasing and sign-preserving, so
        #   squash(chain(x)) > threshold  <=>  x > 0
        # for both output modes (sigmoid threshold 0.5, tanh threshold 0.0).
        # Forward output is bit-identical; removes all EUP transcendentals.
        b = (x > 0.0).astype(jnp.float32)
    else:
        layer_count = len(big_number_list)
        # inner tanh layers
        for i in range(layer_count - 1):
            bn = big_number_list[i]
            if bn != 1.0:
                x = x * bn
            x = jnp.tanh(x)
        # final big-number scale
        bn_last = big_number_list[-1]
        if bn_last != 1.0:
            x = x * bn_last
        # final squash + threshold (Binarize_Forward_only)
        if output_is_01:
            x = jax.nn.sigmoid(x)
            threshold = 0.5
        else:
            x = jnp.tanh(x)
            threshold = 0.0
        b = (x > threshold).astype(jnp.float32)

    if not output_is_01:
        b = b * 2.0 - 1.0

    o_ref[...] = b.astype(o_ref.dtype)


def _round_down(v, m):
    return max((v // m) * m, m)


def binarize_forward(x, *, input_is_01=INPUT_IS_01, output_is_01=OUTPUT_IS_01,
                     big_number_list=BIG_NUMBER_LIST, _force_full_path=False):
    B, N = x.shape
    itemsize = jnp.dtype(x.dtype).itemsize
    per_elem = 2 * 2 * itemsize          # (in + out) x double-buffered, bytes/element

    big_number_list = tuple(float(v) for v in big_number_list)
    use_fast = (not _force_full_path) and all(v > 0.0 for v in big_number_list)

    kernel = partial(
        binarize_kernel,
        input_is_01=input_is_01,
        output_is_01=output_is_01,
        big_number_list=big_number_list,
        use_sign_fast_path=use_fast,
    )

    # --- choose lane-dense, VMEM-sized tiling (this kernel is purely HBM-bound) ---
    if B * N * per_elem <= _VMEM_TILE_BUDGET:
        # Small input: one full-array block, single-step grid (no pipeline overhead,
        # maximally lane-dense stores).
        tb, tn = B, N
        grid = (1,)
        index_map = lambda i: (0, 0)
        dims = ("arbitrary",)
    elif 8 * N * per_elem <= _VMEM_TILE_BUDGET:
        # 1D grid over rows with full-width blocks: contiguous DMAs, lane-dense vst.
        tb = min(_round_down(_VMEM_TILE_BUDGET // (N * per_elem), 8),
                 _round_down(B, 8))
        tn = N
        grid = (pl.cdiv(B, tb),)
        index_map = lambda i: (i, 0)
        dims = ("parallel",)
    else:
        # Extremely wide rows: 2D grid with a large (>=128-multiple) lane slab.
        tb = B if B < 8 else min(_round_down(B, 8), 256)
        tn = min(_round_down(_VMEM_TILE_BUDGET // (tb * per_elem), 128), N)
        grid = (pl.cdiv(B, tb), pl.cdiv(N, tn))
        index_map = lambda i, j: (i, j)
        dims = ("parallel", "parallel")

    # Scoped-VMEM limit sized for double-buffered in+out tiles (+ headroom);
    # bounded at 32 MiB so it is valid on every generation incl. v7x.
    tile_bytes = 2 * (tb * tn * itemsize) * 2
    vmem_limit = int(min(32 * 1024 * 1024, max(16 * 1024 * 1024, tile_bytes + (4 << 20))))

    return pl.pallas_call(
        kernel,
        out_shape=jax.ShapeDtypeStruct((B, N), x.dtype),
        grid_spec=pltpu.PrefetchScalarGridSpec(
            num_scalar_prefetch=0,
            grid=grid,
            in_specs=[pl.BlockSpec((tb, tn), index_map)],
            out_specs=pl.BlockSpec((tb, tn), index_map),
        ),
        compiler_params=pltpu.CompilerParams(
            dimension_semantics=dims,
            vmem_limit_bytes=vmem_limit),
    )(x)


def binarize_reference(x, *, input_is_01=INPUT_IS_01, output_is_01=OUTPUT_IS_01,
                       big_number_list=BIG_NUMBER_LIST):
    """Pure-JAX reference mirroring the PyTorch forward (training mode, full chain)."""
    xf = x.astype(jnp.float32)
    if input_is_01:
        xf = xf - 0.5
    for i in range(len(big_number_list) - 1):
        bn = big_number_list[i]
        if bn != 1.0:
            xf = xf * bn
        xf = jnp.tanh(xf)
    bn = big_number_list[-1]
    if bn != 1.0:
        xf = xf * bn
    if output_is_01:
        xf = jax.nn.sigmoid(xf)
        thr = 0.5
    else:
        xf = jnp.tanh(xf)
        thr = 0.0
    b = (xf > thr).astype(jnp.float32)
    if not output_is_01:
        b = b * 2.0 - 1.0
    return b.astype(x.dtype)


if __name__ == "__main__":
    key = jax.random.PRNGKey(0)
    k1, k2 = jax.random.split(key)

    # Small case (module spec: rank-2 [batch, length within each batch]).
    batch, features = 8, 256
    x_small = jax.random.normal(k1, (batch, features), dtype=jnp.float32)

    out = jax.block_until_ready(binarize_forward(x_small))
    ref = binarize_reference(x_small)
    assert out.shape == ref.shape and out.dtype == ref.dtype
    assert bool(jnp.all(out == ref))

    # Fallback (full tanh/sigmoid) kernel path must agree bit-for-bit too.
    out_full = jax.block_until_ready(binarize_forward(x_small, _force_full_path=True))
    assert bool(jnp.all(out_full == ref))

    # Modest larger case that exercises the 1D row-grid tiling branch.
    x_big = jax.random.normal(k2, (2048, 1024), dtype=jnp.float32)
    out_big = jax.block_until_ready(binarize_forward(x_big))
    assert bool(jnp.all(out_big == binarize_reference(x_big)))

    print("KERNEL_OK")
</pallas_src>

<mosaic_0001>
module attributes {stable_mosaic.version = 11 : i64} {
  func.func @binarize_kernel(%arg0: i32, %arg1: memref<8x256xf32, #tpu.memory_space<vmem>>, %arg2: memref<8x256xf32, #tpu.memory_space<vmem>>) attributes {dimension_semantics = [#tpu.dimension_semantics<arbitrary>], iteration_bounds = array<i64: 1>, scalar_prefetch = 0 : i64, scratch_operands = 0 : i64, tpu.core_type = #tpu.core_type<tc>, window_params = [{pipeline_mode = #tpu.pipeline_mode<synchronous>, transform_indices = @transform_0, window_bounds = array<i64: 8, 256>}, {pipeline_mode = #tpu.pipeline_mode<synchronous>, transform_indices = @transform_1, window_bounds = array<i64: 8, 256>}]} {
    %c0 = arith.constant 0 : index
    %c0_0 = arith.constant 0 : index
    %0 = vector.load %arg1[%c0, %c0_0] : memref<8x256xf32, #tpu.memory_space<vmem>>, vector<8x256xf32>
    %cst = arith.constant 0.000000e+00 : f32
    %1 = vector.broadcast %cst : f32 to vector<8x256xf32>
    %2 = arith.cmpf ogt, %0, %1 : vector<8x256xf32>
    %3 = arith.extui %2 : vector<8x256xi1> to vector<8x256xi32>
    %4 = arith.sitofp %3 : vector<8x256xi32> to vector<8x256xf32>
    %cst_1 = arith.constant 2.000000e+00 : f32
    %5 = vector.broadcast %cst_1 : f32 to vector<8x256xf32>
    %6 = arith.mulf %4, %5 : vector<8x256xf32>
    %cst_2 = arith.constant 1.000000e+00 : f32
    %7 = vector.broadcast %cst_2 : f32 to vector<8x256xf32>
    %8 = arith.subf %6, %7 : vector<8x256xf32>
    %c0_3 = arith.constant 0 : index
    %c0_4 = arith.constant 0 : index
    %9 = vector.load %arg2[%c0_3, %c0_4] : memref<8x256xf32, #tpu.memory_space<vmem>>, vector<8x256xf32>
    tpu.vector_store %arg2[%c0_3, %c0_4], %8 {strides = array<i32>} : memref<8x256xf32, #tpu.memory_space<vmem>>, vector<8x256xf32>,
    return
  }
  func.func @transform_0(%arg0: i32) -> (i32, i32) {
    %c0_i32 = arith.constant 0 : i32
    %c0_i32_0 = arith.constant 0 : i32
    %c0_i32_1 = arith.constant 0 : i32
    return %c0_i32, %c0_i32_0 : i32, i32
  }
  func.func @transform_1(%arg0: i32) -> (i32, i32) {
    %c0_i32 = arith.constant 0 : i32
    %c0_i32_0 = arith.constant 0 : i32
    %c0_i32_1 = arith.constant 0 : i32
    return %c0_i32, %c0_i32_0 : i32, i32
  }
}

</mosaic_0001>

<llo_original>
// kernel: tpu_custom_call.1
$region0: #{tpu_custom_call.1}
  #allocation0 [shape = 'u32[]', space=smem, size = 0x4, offset = 0x4, fixed_abs, tag = 'smem constant byte address 0x4 - core index']
  #allocation1 [shape = 'u32[144,128]{1,0:T(1,128)}', space=vmem, size = 0x12000, scoped, tag = 'internal scratch']
  %s0 = inlined_call_operand.hbm [shape: f32[8,256], index: 0, kind: input, shape index: {}]
  %s1 = inlined_call_operand.hbm [shape: f32[8,256], index: 1, kind: output, shape index: {}]
  %s2 = sld [smem:[#allocation0]]
  $region18: #{tpu_custom_call.1} parent=0
    _
  %s4 = ssub.s32 1, %s2
  %s5 = scalar_select 0, %s4, %s2
  $region1: #{tpu_custom_call.1} parent=0
    #allocation2 [shape = 'u8[8192]{0}', space=vmem, size = 0x2000, scoped, tag = 'input window, operand 0, single buffered']
    #allocation3 [shape = 's32[1]{0}', space=sflag, size = 0x4, scoped, tag = 'scoped memory for tpu_custom_call.1']
    #allocation4 [shape = 's32[1]{0}', space=sflag, size = 0x4, scoped, tag = 'scoped memory for tpu_custom_call.1']
    #allocation5 [shape = 'u8[8192]{0}', space=vmem, size = 0x2000, scoped, tag = 'output window, operand 0, single buffered']
    %6 = vsyncpa [#allocation3], 0
    %7 = vsyncpa [#allocation4], 0
    // Predicated region
    $region2: #{tpu_custom_call.1} parent=1 // pred_check
      _
    $region3: #{tpu_custom_call.1} parent=1 // pred_check_branch
      %9 = sbr.rel (0) target = $region5
    $region4: #{tpu_custom_call.1} parent=1 // pred_region
      %s11 = ssub.s32 256, 256
      %12 = vsyncadd [#allocation3], %s11
      %s14 = sshll.u32 [#allocation2], 4
      %s15 = int_to_ptr.vmem [resolvable:$true] %s14
      %17 = dma.hbm_to_vmem [thread:$0]  %s0, 256, %s15, [#allocation3]
    $region5: #{tpu_custom_call.1} parent=1 // pred_fallthru
      _
    // Predicated region
    $region6: #{tpu_custom_call.1} parent=1 // pred_check
      _
    $region7: #{tpu_custom_call.1} parent=1 // pred_check_branch
      %19 = sbr.rel (0) target = $region9
    $region8: #{tpu_custom_call.1} parent=1 // pred_region
      %20 = dma.done [#allocation3], 256
    $region9: #{tpu_custom_call.1} parent=1 // pred_fallthru
      _
    %v21 = vld [vmem:[#allocation2] sm:$0xff]
    %v22 = vld [vmem:[#allocation2 + $0x8] sm:$0xff]
    %vm23 = vcmp.gt.f32.partialorder %v21, 0.0
    %vm24 = vcmp.gt.f32.partialorder %v22, 0.0
    %v25 = vsel %vm23, 1, 0
    %v26 = vsel %vm24, 1, 0
    %v27 = vcvt.s32.f32 %v25
    %v28 = vcvt.s32.f32 %v26
    %v29 = vmul.f32 %v27, 2.0
    %v30 = vmul.f32 %v28, 2.0
    %v31 = vsub.f32 %v29, 1.0
    %v32 = vsub.f32 %v30, 1.0
    %33 = vst [vmem:[#allocation5] sm:$0xff] %v31
    %34 = vst [vmem:[#allocation5 + $0x8] sm:$0xff] %v32
    // Predicated region
    $region10: #{tpu_custom_call.1} parent=1 // pred_check
      _
    $region11: #{tpu_custom_call.1} parent=1 // pred_check_branch
      %36 = sbr.rel (0) target = $region13
    $region12: #{tpu_custom_call.1} parent=1 // pred_region
      %s38 = ssub.s32 256, 256
      %39 = vsyncadd [#allocation4], %s38
      %s41 = sshll.u32 [#allocation5], 4
      %s42 = int_to_ptr.vmem [resolvable:$true] %s41
      %44 = dma.vmem_to_hbm [thread:$0]  %s42, 256, %s1, [#allocation4]
    $region13: #{tpu_custom_call.1} parent=1 // pred_fallthru
      _
    // Predicated region
    $region14: #{tpu_custom_call.1} parent=1 // pred_check
      _
    $region15: #{tpu_custom_call.1} parent=1 // pred_check_branch
      %46 = sbr.rel (0) target = $region17
    $region16: #{tpu_custom_call.1} parent=1 // pred_region
      %47 = dma.done [#allocation4], 256
    $region17: #{tpu_custom_call.1} parent=1 // pred_fallthru
      _
    %48 = vsyncpa [#allocation3], 1
    %49 = vsyncpa [#allocation4], 1

</llo_original>
